<compile_context>
chip_gen: v5e
topology: v5e:2x2
jax: 0.10.0
libtpu: 0.0.40
codegen_flags: <defaults>
</compile_context>

<pallas_src>
import jax
import jax.numpy as jnp
from jax import lax
from jax.experimental import pallas as pl
from jax.experimental.pallas import tpu as pltpu


def lstm_net_kernel(ids_ref, emb_ref, wih_ref, whh_ref, b_ref,
                    h0_ref, c0_ref, fcw_ref, fcb_ref, out_ref):
    S = ids_ref.shape[0]
    V, E = emb_ref.shape
    H = h0_ref.shape[1]

    # ---- In-kernel embedding gather via one-hot matmul (vectorized, no
    # dynamic sublane indexing; (S,V)@(V,E) is tiny). ----
    ids = ids_ref[...]                                            # (S, 1) int32
    onehot = (ids == lax.broadcasted_iota(jnp.int32, (S, V), 1)
              ).astype(jnp.float32)                               # (S, V)
    x_emb = jnp.dot(onehot, emb_ref[...],
                    preferred_element_type=jnp.float32)           # (S, E)

    # ---- Hoisted input projection: one matmul off the serial chain. ----
    gates_x = (jnp.dot(x_emb, wih_ref[...],
                       preferred_element_type=jnp.float32)
               + b_ref[...])                                      # (S, 4H)

    whh = whh_ref[...]                                            # (H, 4H)
    h = h0_ref[...]                                               # (1, H)
    c = c0_ref[...]                                               # (1, H)

    # ---- Fully unrolled recurrence (S is static). ----
    for t in range(S):
        gates = gates_x[t:t + 1, :] + jnp.dot(
            h, whh, preferred_element_type=jnp.float32)           # (1, 4H)
        # Two full-vreg transcendentals, then lane-slice the quarters.
        sig = jax.nn.sigmoid(gates)                               # (1, 4H)
        tng = jnp.tanh(gates)                                     # (1, 4H)
        i_g = sig[:, 0:H]
        f_g = sig[:, H:2 * H]
        g_g = tng[:, 2 * H:3 * H]
        o_g = sig[:, 3 * H:4 * H]
        c = f_g * c + i_g * g_g
        h = o_g * jnp.tanh(c)

    # F.dropout(hn, training=...): identity in eval mode.
    # TODO(synk): training-mode dropout mask (stateful PRNG) not implemented.
    logits = (jnp.dot(h, fcw_ref[...], preferred_element_type=jnp.float32)
              + fcb_ref[...])                                     # (1, 4)

    m = jnp.max(logits, axis=1, keepdims=True)
    lse = m + jnp.log(jnp.sum(jnp.exp(logits - m), axis=1, keepdims=True))
    out_ref[...] = logits - lse                                   # log_softmax, dim=1


def lstm_net_forward(token_ids, params):
    """Wrapper: everything (gather included) runs inside one Pallas kernel."""
    ids2d = token_ids.astype(jnp.int32).reshape(-1, 1)            # (S, 1)

    vmem = pl.BlockSpec(memory_space=pltpu.MemorySpace.VMEM)
    out = pl.pallas_call(
        lstm_net_kernel,
        out_shape=jax.ShapeDtypeStruct((1, 4), jnp.float32),
        in_specs=[vmem] * 9,
        out_specs=vmem,
    )(ids2d,
      params["embed"],
      params["w_ih_t"], params["w_hh_t"], params["b_gates"],
      params["h0"], params["c0"],
      params["fc_w_t"], params["fc_b"])
    return out


def init_params(key, vocab_size, embed_dim):
    E = embed_dim
    H = embed_dim
    ks = jax.random.split(key, 8)
    scale = 1.0 / jnp.sqrt(H)
    params = {
        "embed":   jax.random.normal(ks[0], (vocab_size, E), jnp.float32),
        # Stored pre-transposed for x @ W^T style matmuls inside the kernel.
        "w_ih_t":  (jax.random.uniform(ks[1], (E, 4 * H), jnp.float32,
                                       -1.0, 1.0) * scale),
        "w_hh_t":  (jax.random.uniform(ks[2], (H, 4 * H), jnp.float32,
                                       -1.0, 1.0) * scale),
        # b_ih + b_hh folded into a single bias.
        "b_gates": (jax.random.uniform(ks[3], (1, 4 * H), jnp.float32,
                                       -1.0, 1.0) * scale),
        "h0":      jax.random.normal(ks[4], (1, H), jnp.float32),
        "c0":      jax.random.normal(ks[5], (1, H), jnp.float32),
        "fc_w_t":  (jax.random.uniform(ks[6], (H, 4), jnp.float32,
                                       -1.0, 1.0) * scale),
        "fc_b":    (jax.random.uniform(ks[7], (1, 4), jnp.float32,
                                       -1.0, 1.0) * scale),
    }
    return params


if __name__ == "__main__":
    vocab_size = 16
    embed_dim = 32
    seq_len = 8

    key = jax.random.PRNGKey(0)
    k_par, k_ids = jax.random.split(key)
    params = init_params(k_par, vocab_size, embed_dim)
    token_ids = jax.random.randint(k_ids, (seq_len,), 0, vocab_size,
                                   dtype=jnp.int32)

    out = jax.jit(lstm_net_forward)(token_ids, params)
    out = jax.block_until_ready(out)

    assert out.shape == (1, 4)
    assert bool(jnp.all(jnp.isfinite(out)))
    # log_softmax rows must sum (in prob space) to ~1
    assert bool(jnp.allclose(jnp.sum(jnp.exp(out), axis=1), 1.0, atol=1e-5))
    print("KERNEL_OK")
</pallas_src>

<mosaic_0001>
module attributes {stable_mosaic.version = 11 : i64} {
  func.func @lstm_net_kernel(%arg0: memref<8x1xi32, #tpu.memory_space<vmem>>, %arg1: memref<16x32xf32, #tpu.memory_space<vmem>>, %arg2: memref<32x128xf32, #tpu.memory_space<vmem>>, %arg3: memref<32x128xf32, #tpu.memory_space<vmem>>, %arg4: memref<1x128xf32, #tpu.memory_space<vmem>>, %arg5: memref<1x32xf32, #tpu.memory_space<vmem>>, %arg6: memref<1x32xf32, #tpu.memory_space<vmem>>, %arg7: memref<32x4xf32, #tpu.memory_space<vmem>>, %arg8: memref<1x4xf32, #tpu.memory_space<vmem>>, %arg9: memref<1x4xf32, #tpu.memory_space<vmem>>) attributes {dimension_semantics = [], scalar_prefetch = 0 : i64, scratch_operands = 0 : i64, tpu.core_type = #tpu.core_type<tc>} {
    %c0 = arith.constant 0 : index
    %c0_0 = arith.constant 0 : index
    %0 = vector.load %arg0[%c0, %c0_0] : memref<8x1xi32, #tpu.memory_space<vmem>>, vector<8x1xi32>
    %1 = tpu.iota {dimensions = array<i32: 1>} : vector<8x16xi32>
    %2 = vector.broadcast %0 : vector<8x1xi32> to vector<8x16xi32>
    %3 = arith.cmpi eq, %2, %1 : vector<8x16xi32>
    %4 = arith.extui %3 : vector<8x16xi1> to vector<8x16xi32>
    %5 = arith.sitofp %4 : vector<8x16xi32> to vector<8x16xf32>
    %c0_1 = arith.constant 0 : index
    %c0_2 = arith.constant 0 : index
    %6 = vector.load %arg1[%c0_1, %c0_2] : memref<16x32xf32, #tpu.memory_space<vmem>>, vector<16x32xf32>
    %cst = arith.constant dense<0.000000e+00> : vector<8x32xf32>
    %7 = tpu.matmul %5, %6, %cst {dimension_numbers = #tpu.dot_dimension_numbers<[1], [0], [0], [1], [0, 0, 1, 1], [], []>} : vector<8x16xf32>, vector<16x32xf32>, vector<8x32xf32> -> vector<8x32xf32>
    %c0_3 = arith.constant 0 : index
    %c0_4 = arith.constant 0 : index
    %8 = vector.load %arg2[%c0_3, %c0_4] : memref<32x128xf32, #tpu.memory_space<vmem>>, vector<32x128xf32>
    %cst_5 = arith.constant dense<0.000000e+00> : vector<8x128xf32>
    %9 = tpu.matmul %7, %8, %cst_5 {dimension_numbers = #tpu.dot_dimension_numbers<[1], [0], [0], [1], [0, 0, 1, 1], [], []>} : vector<8x32xf32>, vector<32x128xf32>, vector<8x128xf32> -> vector<8x128xf32>
    %c0_6 = arith.constant 0 : index
    %c0_7 = arith.constant 0 : index
    %10 = vector.load %arg4[%c0_6, %c0_7] : memref<1x128xf32, #tpu.memory_space<vmem>>, vector<1x128xf32>
    %11 = vector.broadcast %10 : vector<1x128xf32> to vector<8x128xf32>
    %12 = arith.addf %9, %11 : vector<8x128xf32>
    %c0_8 = arith.constant 0 : index
    %c0_9 = arith.constant 0 : index
    %13 = vector.load %arg3[%c0_8, %c0_9] : memref<32x128xf32, #tpu.memory_space<vmem>>, vector<32x128xf32>
    %c0_10 = arith.constant 0 : index
    %c0_11 = arith.constant 0 : index
    %14 = vector.load %arg5[%c0_10, %c0_11] : memref<1x32xf32, #tpu.memory_space<vmem>>, vector<1x32xf32>
    %c0_12 = arith.constant 0 : index
    %c0_13 = arith.constant 0 : index
    %15 = vector.load %arg6[%c0_12, %c0_13] : memref<1x32xf32, #tpu.memory_space<vmem>>, vector<1x32xf32>
    %16 = vector.extract_strided_slice %12 {offsets = [0, 0], sizes = [1, 128], strides = [1, 1]} : vector<8x128xf32> to vector<1x128xf32>
    %cst_14 = arith.constant dense<0.000000e+00> : vector<1x128xf32>
    %17 = tpu.matmul %14, %13, %cst_14 {dimension_numbers = #tpu.dot_dimension_numbers<[1], [0], [0], [1], [0, 0, 1, 1], [], []>} : vector<1x32xf32>, vector<32x128xf32>, vector<1x128xf32> -> vector<1x128xf32>
    %18 = arith.addf %16, %17 : vector<1x128xf32>
    %19 = arith.negf %18 : vector<1x128xf32>
    %20 = math.exp %19 : vector<1x128xf32>
    %cst_15 = arith.constant 1.000000e+00 : f32
    %21 = vector.broadcast %cst_15 : f32 to vector<1x128xf32>
    %22 = arith.addf %21, %20 : vector<1x128xf32>
    %23 = arith.divf %21, %22 : vector<1x128xf32>
    %24 = math.tanh %18 : vector<1x128xf32>
    %25 = vector.extract_strided_slice %23 {offsets = [0, 0], sizes = [1, 32], strides = [1, 1]} : vector<1x128xf32> to vector<1x32xf32>
    %26 = vector.extract_strided_slice %23 {offsets = [0, 32], sizes = [1, 32], strides = [1, 1]} : vector<1x128xf32> to vector<1x32xf32>
    %27 = vector.extract_strided_slice %24 {offsets = [0, 64], sizes = [1, 32], strides = [1, 1]} : vector<1x128xf32> to vector<1x32xf32>
    %28 = vector.extract_strided_slice %23 {offsets = [0, 96], sizes = [1, 32], strides = [1, 1]} : vector<1x128xf32> to vector<1x32xf32>
    %29 = arith.mulf %26, %15 : vector<1x32xf32>
    %30 = arith.mulf %25, %27 : vector<1x32xf32>
    %31 = arith.addf %29, %30 : vector<1x32xf32>
    %32 = math.tanh %31 : vector<1x32xf32>
    %33 = arith.mulf %28, %32 : vector<1x32xf32>
    %34 = vector.extract_strided_slice %12 {offsets = [1, 0], sizes = [1, 128], strides = [1, 1]} : vector<8x128xf32> to vector<1x128xf32>
    %cst_16 = arith.constant dense<0.000000e+00> : vector<1x128xf32>
    %35 = tpu.matmul %33, %13, %cst_16 {dimension_numbers = #tpu.dot_dimension_numbers<[1], [0], [0], [1], [0, 0, 1, 1], [], []>} : vector<1x32xf32>, vector<32x128xf32>, vector<1x128xf32> -> vector<1x128xf32>
    %36 = arith.addf %34, %35 : vector<1x128xf32>
    %37 = arith.negf %36 : vector<1x128xf32>
    %38 = math.exp %37 : vector<1x128xf32>
    %cst_17 = arith.constant 1.000000e+00 : f32
    %39 = vector.broadcast %cst_17 : f32 to vector<1x128xf32>
    %40 = arith.addf %39, %38 : vector<1x128xf32>
    %41 = arith.divf %39, %40 : vector<1x128xf32>
    %42 = math.tanh %36 : vector<1x128xf32>
    %43 = vector.extract_strided_slice %41 {offsets = [0, 0], sizes = [1, 32], strides = [1, 1]} : vector<1x128xf32> to vector<1x32xf32>
    %44 = vector.extract_strided_slice %41 {offsets = [0, 32], sizes = [1, 32], strides = [1, 1]} : vector<1x128xf32> to vector<1x32xf32>
    %45 = vector.extract_strided_slice %42 {offsets = [0, 64], sizes = [1, 32], strides = [1, 1]} : vector<1x128xf32> to vector<1x32xf32>
    %46 = vector.extract_strided_slice %41 {offsets = [0, 96], sizes = [1, 32], strides = [1, 1]} : vector<1x128xf32> to vector<1x32xf32>
    %47 = arith.mulf %44, %31 : vector<1x32xf32>
    %48 = arith.mulf %43, %45 : vector<1x32xf32>
    %49 = arith.addf %47, %48 : vector<1x32xf32>
    %50 = math.tanh %49 : vector<1x32xf32>
    %51 = arith.mulf %46, %50 : vector<1x32xf32>
    %52 = vector.extract_strided_slice %12 {offsets = [2, 0], sizes = [1, 128], strides = [1, 1]} : vector<8x128xf32> to vector<1x128xf32>
    %cst_18 = arith.constant dense<0.000000e+00> : vector<1x128xf32>
    %53 = tpu.matmul %51, %13, %cst_18 {dimension_numbers = #tpu.dot_dimension_numbers<[1], [0], [0], [1], [0, 0, 1, 1], [], []>} : vector<1x32xf32>, vector<32x128xf32>, vector<1x128xf32> -> vector<1x128xf32>
    %54 = arith.addf %52, %53 : vector<1x128xf32>
    %55 = arith.negf %54 : vector<1x128xf32>
    %56 = math.exp %55 : vector<1x128xf32>
    %cst_19 = arith.constant 1.000000e+00 : f32
    %57 = vector.broadcast %cst_19 : f32 to vector<1x128xf32>
    %58 = arith.addf %57, %56 : vector<1x128xf32>
    %59 = arith.divf %57, %58 : vector<1x128xf32>
    %60 = math.tanh %54 : vector<1x128xf32>
    %61 = vector.extract_strided_slice %59 {offsets = [0, 0], sizes = [1, 32], strides = [1, 1]} : vector<1x128xf32> to vector<1x32xf32>
    %62 = vector.extract_strided_slice %59 {offsets = [0, 32], sizes = [1, 32], strides = [1, 1]} : vector<1x128xf32> to vector<1x32xf32>
    %63 = vector.extract_strided_slice %60 {offsets = [0, 64], sizes = [1, 32], strides = [1, 1]} : vector<1x128xf32> to vector<1x32xf32>
    %64 = vector.extract_strided_slice %59 {offsets = [0, 96], sizes = [1, 32], strides = [1, 1]} : vector<1x128xf32> to vector<1x32xf32>
    %65 = arith.mulf %62, %49 : vector<1x32xf32>
    %66 = arith.mulf %61, %63 : vector<1x32xf32>
    %67 = arith.addf %65, %66 : vector<1x32xf32>
    %68 = math.tanh %67 : vector<1x32xf32>
    %69 = arith.mulf %64, %68 : vector<1x32xf32>
    %70 = vector.extract_strided_slice %12 {offsets = [3, 0], sizes = [1, 128], strides = [1, 1]} : vector<8x128xf32> to vector<1x128xf32>
    %cst_20 = arith.constant dense<0.000000e+00> : vector<1x128xf32>
    %71 = tpu.matmul %69, %13, %cst_20 {dimension_numbers = #tpu.dot_dimension_numbers<[1], [0], [0], [1], [0, 0, 1, 1], [], []>} : vector<1x32xf32>, vector<32x128xf32>, vector<1x128xf32> -> vector<1x128xf32>
    %72 = arith.addf %70, %71 : vector<1x128xf32>
    %73 = arith.negf %72 : vector<1x128xf32>
    %74 = math.exp %73 : vector<1x128xf32>
    %cst_21 = arith.constant 1.000000e+00 : f32
    %75 = vector.broadcast %cst_21 : f32 to vector<1x128xf32>
    %76 = arith.addf %75, %74 : vector<1x128xf32>
    %77 = arith.divf %75, %76 : vector<1x128xf32>
    %78 = math.tanh %72 : vector<1x128xf32>
    %79 = vector.extract_strided_slice %77 {offsets = [0, 0], sizes = [1, 32], strides = [1, 1]} : vector<1x128xf32> to vector<1x32xf32>
    %80 = vector.extract_strided_slice %77 {offsets = [0, 32], sizes = [1, 32], strides = [1, 1]} : vector<1x128xf32> to vector<1x32xf32>
    %81 = vector.extract_strided_slice %78 {offsets = [0, 64], sizes = [1, 32], strides = [1, 1]} : vector<1x128xf32> to vector<1x32xf32>
    %82 = vector.extract_strided_slice %77 {offsets = [0, 96], sizes = [1, 32], strides = [1, 1]} : vector<1x128xf32> to vector<1x32xf32>
    %83 = arith.mulf %80, %67 : vector<1x32xf32>
    %84 = arith.mulf %79, %81 : vector<1x32xf32>
    %85 = arith.addf %83, %84 : vector<1x32xf32>
    %86 = math.tanh %85 : vector<1x32xf32>
    %87 = arith.mulf %82, %86 : vector<1x32xf32>
    %88 = vector.extract_strided_slice %12 {offsets = [4, 0], sizes = [1, 128], strides = [1, 1]} : vector<8x128xf32> to vector<1x128xf32>
    %cst_22 = arith.constant dense<0.000000e+00> : vector<1x128xf32>
    %89 = tpu.matmul %87, %13, %cst_22 {dimension_numbers = #tpu.dot_dimension_numbers<[1], [0], [0], [1], [0, 0, 1, 1], [], []>} : vector<1x32xf32>, vector<32x128xf32>, vector<1x128xf32> -> vector<1x128xf32>
    %90 = arith.addf %88, %89 : vector<1x128xf32>
    %91 = arith.negf %90 : vector<1x128xf32>
    %92 = math.exp %91 : vector<1x128xf32>
    %cst_23 = arith.constant 1.000000e+00 : f32
    %93 = vector.broadcast %cst_23 : f32 to vector<1x128xf32>
    %94 = arith.addf %93, %92 : vector<1x128xf32>
    %95 = arith.divf %93, %94 : vector<1x128xf32>
    %96 = math.tanh %90 : vector<1x128xf32>
    %97 = vector.extract_strided_slice %95 {offsets = [0, 0], sizes = [1, 32], strides = [1, 1]} : vector<1x128xf32> to vector<1x32xf32>
    %98 = vector.extract_strided_slice %95 {offsets = [0, 32], sizes = [1, 32], strides = [1, 1]} : vector<1x128xf32> to vector<1x32xf32>
    %99 = vector.extract_strided_slice %96 {offsets = [0, 64], sizes = [1, 32], strides = [1, 1]} : vector<1x128xf32> to vector<1x32xf32>
    %100 = vector.extract_strided_slice %95 {offsets = [0, 96], sizes = [1, 32], strides = [1, 1]} : vector<1x128xf32> to vector<1x32xf32>
    %101 = arith.mulf %98, %85 : vector<1x32xf32>
    %102 = arith.mulf %97, %99 : vector<1x32xf32>
    %103 = arith.addf %101, %102 : vector<1x32xf32>
    %104 = math.tanh %103 : vector<1x32xf32>
    %105 = arith.mulf %100, %104 : vector<1x32xf32>
    %106 = vector.extract_strided_slice %12 {offsets = [5, 0], sizes = [1, 128], strides = [1, 1]} : vector<8x128xf32> to vector<1x128xf32>
    %cst_24 = arith.constant dense<0.000000e+00> : vector<1x128xf32>
    %107 = tpu.matmul %105, %13, %cst_24 {dimension_numbers = #tpu.dot_dimension_numbers<[1], [0], [0], [1], [0, 0, 1, 1], [], []>} : vector<1x32xf32>, vector<32x128xf32>, vector<1x128xf32> -> vector<1x128xf32>
    %108 = arith.addf %106, %107 : vector<1x128xf32>
    %109 = arith.negf %108 : vector<1x128xf32>
    %110 = math.exp %109 : vector<1x128xf32>
    %cst_25 = arith.constant 1.000000e+00 : f32
    %111 = vector.broadcast %cst_25 : f32 to vector<1x128xf32>
    %112 = arith.addf %111, %110 : vector<1x128xf32>
    %113 = arith.divf %111, %112 : vector<1x128xf32>
    %114 = math.tanh %108 : vector<1x128xf32>
    %115 = vector.extract_strided_slice %113 {offsets = [0, 0], sizes = [1, 32], strides = [1, 1]} : vector<1x128xf32> to vector<1x32xf32>
    %116 = vector.extract_strided_slice %113 {offsets = [0, 32], sizes = [1, 32], strides = [1, 1]} : vector<1x128xf32> to vector<1x32xf32>
    %117 = vector.extract_strided_slice %114 {offsets = [0, 64], sizes = [1, 32], strides = [1, 1]} : vector<1x128xf32> to vector<1x32xf32>
    %118 = vector.extract_strided_slice %113 {offsets = [0, 96], sizes = [1, 32], strides = [1, 1]} : vector<1x128xf32> to vector<1x32xf32>
    %119 = arith.mulf %116, %103 : vector<1x32xf32>
    %120 = arith.mulf %115, %117 : vector<1x32xf32>
    %121 = arith.addf %119, %120 : vector<1x32xf32>
    %122 = math.tanh %121 : vector<1x32xf32>
    %123 = arith.mulf %118, %122 : vector<1x32xf32>
    %124 = vector.extract_strided_slice %12 {offsets = [6, 0], sizes = [1, 128], strides = [1, 1]} : vector<8x128xf32> to vector<1x128xf32>
    %cst_26 = arith.constant dense<0.000000e+00> : vector<1x128xf32>
    %125 = tpu.matmul %123, %13, %cst_26 {dimension_numbers = #tpu.dot_dimension_numbers<[1], [0], [0], [1], [0, 0, 1, 1], [], []>} : vector<1x32xf32>, vector<32x128xf32>, vector<1x128xf32> -> vector<1x128xf32>
    %126 = arith.addf %124, %125 : vector<1x128xf32>
    %127 = arith.negf %126 : vector<1x128xf32>
    %128 = math.exp %127 : vector<1x128xf32>
    %cst_27 = arith.constant 1.000000e+00 : f32
    %129 = vector.broadcast %cst_27 : f32 to vector<1x128xf32>
    %130 = arith.addf %129, %128 : vector<1x128xf32>
    %131 = arith.divf %129, %130 : vector<1x128xf32>
    %132 = math.tanh %126 : vector<1x128xf32>
    %133 = vector.extract_strided_slice %131 {offsets = [0, 0], sizes = [1, 32], strides = [1, 1]} : vector<1x128xf32> to vector<1x32xf32>
    %134 = vector.extract_strided_slice %131 {offsets = [0, 32], sizes = [1, 32], strides = [1, 1]} : vector<1x128xf32> to vector<1x32xf32>
    %135 = vector.extract_strided_slice %132 {offsets = [0, 64], sizes = [1, 32], strides = [1, 1]} : vector<1x128xf32> to vector<1x32xf32>
    %136 = vector.extract_strided_slice %131 {offsets = [0, 96], sizes = [1, 32], strides = [1, 1]} : vector<1x128xf32> to vector<1x32xf32>
    %137 = arith.mulf %134, %121 : vector<1x32xf32>
    %138 = arith.mulf %133, %135 : vector<1x32xf32>
    %139 = arith.addf %137, %138 : vector<1x32xf32>
    %140 = math.tanh %139 : vector<1x32xf32>
    %141 = arith.mulf %136, %140 : vector<1x32xf32>
    %142 = vector.extract_strided_slice %12 {offsets = [7, 0], sizes = [1, 128], strides = [1, 1]} : vector<8x128xf32> to vector<1x128xf32>
    %cst_28 = arith.constant dense<0.000000e+00> : vector<1x128xf32>
    %143 = tpu.matmul %141, %13, %cst_28 {dimension_numbers = #tpu.dot_dimension_numbers<[1], [0], [0], [1], [0, 0, 1, 1], [], []>} : vector<1x32xf32>, vector<32x128xf32>, vector<1x128xf32> -> vector<1x128xf32>
    %144 = arith.addf %142, %143 : vector<1x128xf32>
    %145 = arith.negf %144 : vector<1x128xf32>
    %146 = math.exp %145 : vector<1x128xf32>
    %cst_29 = arith.constant 1.000000e+00 : f32
    %147 = vector.broadcast %cst_29 : f32 to vector<1x128xf32>
    %148 = arith.addf %147, %146 : vector<1x128xf32>
    %149 = arith.divf %147, %148 : vector<1x128xf32>
    %150 = math.tanh %144 : vector<1x128xf32>
    %151 = vector.extract_strided_slice %149 {offsets = [0, 0], sizes = [1, 32], strides = [1, 1]} : vector<1x128xf32> to vector<1x32xf32>
    %152 = vector.extract_strided_slice %149 {offsets = [0, 32], sizes = [1, 32], strides = [1, 1]} : vector<1x128xf32> to vector<1x32xf32>
    %153 = vector.extract_strided_slice %150 {offsets = [0, 64], sizes = [1, 32], strides = [1, 1]} : vector<1x128xf32> to vector<1x32xf32>
    %154 = vector.extract_strided_slice %149 {offsets = [0, 96], sizes = [1, 32], strides = [1, 1]} : vector<1x128xf32> to vector<1x32xf32>
    %155 = arith.mulf %152, %139 : vector<1x32xf32>
    %156 = arith.mulf %151, %153 : vector<1x32xf32>
    %157 = arith.addf %155, %156 : vector<1x32xf32>
    %158 = math.tanh %157 : vector<1x32xf32>
    %159 = arith.mulf %154, %158 : vector<1x32xf32>
    %c0_30 = arith.constant 0 : index
    %c0_31 = arith.constant 0 : index
    %160 = vector.load %arg7[%c0_30, %c0_31] : memref<32x4xf32, #tpu.memory_space<vmem>>, vector<32x4xf32>
    %cst_32 = arith.constant dense<0.000000e+00> : vector<1x4xf32>
    %161 = tpu.matmul %159, %160, %cst_32 {dimension_numbers = #tpu.dot_dimension_numbers<[1], [0], [0], [1], [0, 0, 1, 1], [], []>} : vector<1x32xf32>, vector<32x4xf32>, vector<1x4xf32> -> vector<1x4xf32>
    %c0_33 = arith.constant 0 : index
    %c0_34 = arith.constant 0 : index
    %162 = vector.load %arg8[%c0_33, %c0_34] : memref<1x4xf32, #tpu.memory_space<vmem>>, vector<1x4xf32>
    %163 = arith.addf %161, %162 : vector<1x4xf32>
    %cst_35 = arith.constant dense<0xFF800000> : vector<1xf32>
    %164 = vector.multi_reduction <maximumf>, %163, %cst_35 [1] : vector<1x4xf32> to vector<1xf32>
    %165 = vector.shape_cast %164 : vector<1xf32> to vector<1x1xf32>
    %166 = vector.broadcast %165 : vector<1x1xf32> to vector<1x4xf32>
    %167 = arith.subf %163, %166 : vector<1x4xf32>
    %168 = math.exp %167 : vector<1x4xf32>
    %cst_36 = arith.constant dense<0.000000e+00> : vector<1xf32>
    %169 = vector.multi_reduction <add>, %168, %cst_36 [1] : vector<1x4xf32> to vector<1xf32>
    %170 = vector.shape_cast %169 : vector<1xf32> to vector<1x1xf32>
    %171 = math.log %170 : vector<1x1xf32>
    %172 = arith.addf %165, %171 : vector<1x1xf32>
    %173 = vector.broadcast %172 : vector<1x1xf32> to vector<1x4xf32>
    %174 = arith.subf %163, %173 : vector<1x4xf32>
    %c0_37 = arith.constant 0 : index
    %c0_38 = arith.constant 0 : index
    %175 = vector.load %arg9[%c0_37, %c0_38] : memref<1x4xf32, #tpu.memory_space<vmem>>, vector<1x4xf32>
    tpu.vector_store %arg9[%c0_37, %c0_38], %174 {strides = array<i32>} : memref<1x4xf32, #tpu.memory_space<vmem>>, vector<1x4xf32>,
    return
  }
}

</mosaic_0001>

<llo_original>
// kernel: lstm_net_forward.1
$region0: #{lstm_net_forward.1}
  #allocation0 [shape = 'u32[]', space=smem, size = 0x4, offset = 0x4, fixed_abs, tag = 'smem constant byte address 0x4 - core index']
  #allocation1 [shape = 'u32[72,128]{1,0:T(1,128)}', space=vmem, size = 0x9000, scoped, tag = 'internal scratch']
  %s0 = inlined_call_operand.vmem [shape: s32[8,1], index: 0, kind: input, shape index: {}]
  %s1 = inlined_call_operand.hbm [shape: f32[16,32], index: 1, kind: input, shape index: {}]
  %s2 = inlined_call_operand.vmem [shape: f32[32,128], index: 2, kind: input, shape index: {}]
  %s3 = inlined_call_operand.hbm [shape: f32[32,128], index: 3, kind: input, shape index: {}]
  %s4 = inlined_call_operand.vmem [shape: f32[1,128], index: 4, kind: input, shape index: {}]
  %s5 = inlined_call_operand.vmem [shape: f32[1,32], index: 5, kind: input, shape index: {}]
  %s6 = inlined_call_operand.vmem [shape: f32[1,32], index: 6, kind: input, shape index: {}]
  %s7 = inlined_call_operand.vmem [shape: f32[32,4], index: 7, kind: input, shape index: {}]
  %s8 = inlined_call_operand.vmem [shape: f32[1,4], index: 8, kind: input, shape index: {}]
  %s9 = inlined_call_operand.hbm [shape: f32[1,4], index: 9, kind: output, shape index: {}]
  %s10 = sld [smem:[#allocation0]]
  $region54: #{lstm_net_forward.1} parent=0
    _
  %s12 = ssub.s32 1, %s10
  %s13 = scalar_select 0, %s12, %s10
  $region1: #{lstm_net_forward.1} parent=0
    #allocation2 [shape = 'u8[8192]{0}', space=vmem, size = 0x2000, scoped, tag = 'input window, operand 1, single buffered']
    #allocation3 [shape = 's32[1]{0}', space=sflag, size = 0x4, scoped, tag = 'scoped memory for lstm_net_forward.1']
    #allocation4 [shape = 's32[1]{0}', space=sflag, size = 0x4, scoped, tag = 'scoped memory for lstm_net_forward.1']
    #allocation5 [shape = 'u8[16384]{0}', space=vmem, size = 0x4000, scoped, tag = 'input window, operand 3, single buffered']
    #allocation6 [shape = 's32[1]{0}', space=sflag, size = 0x4, scoped, tag = 'scoped memory for lstm_net_forward.1']
    #allocation7 [shape = 'u8[512]{0}', space=vmem, size = 0x400, scoped, tag = 'output window, operand 0, single buffered']
    %14 = vsyncpa [#allocation3], 0
    %15 = vsyncpa [#allocation6], 0
    %16 = vsyncpa [#allocation4], 0
    // Predicated region
    $region2: #{lstm_net_forward.1} parent=1 // pred_check
      _
    $region3: #{lstm_net_forward.1} parent=1 // pred_check_branch
      %18 = sbr.rel (0) target = $region5
    $region4: #{lstm_net_forward.1} parent=1 // pred_region
      _
    $region5: #{lstm_net_forward.1} parent=1 // pred_fallthru
      _
    // Predicated region
    $region6: #{lstm_net_forward.1} parent=1 // pred_check
      _
    $region7: #{lstm_net_forward.1} parent=1 // pred_check_branch
      %20 = sbr.rel (0) target = $region9
    $region8: #{lstm_net_forward.1} parent=1 // pred_region
      %22 = vsyncadd [#allocation3], 0
      %s23 = sshll.u32 %s1, 4
      %s24 = int_to_ptr.hbm [resolvable:$true] %s23
      %s25 = sshll.u32 [#allocation2], 4
      %s26 = int_to_ptr.vmem [resolvable:$true] %s25
      %31 = dma.hbm_to_vmem [thread:$0]  %s24, 256, %s26, [#allocation3], 128, 128, 8
    $region9: #{lstm_net_forward.1} parent=1 // pred_fallthru
      _
    // Predicated region
    $region10: #{lstm_net_forward.1} parent=1 // pred_check
      _
    $region11: #{lstm_net_forward.1} parent=1 // pred_check_branch
      %33 = sbr.rel (0) target = $region13
    $region12: #{lstm_net_forward.1} parent=1 // pred_region
      _
    $region13: #{lstm_net_forward.1} parent=1 // pred_fallthru
      _
    // Predicated region
    $region14: #{lstm_net_forward.1} parent=1 // pred_check
      _
    $region15: #{lstm_net_forward.1} parent=1 // pred_check_branch
      %35 = sbr.rel (0) target = $region17
    $region16: #{lstm_net_forward.1} parent=1 // pred_region
      %37 = vsyncadd [#allocation6], 0
      %s38 = sshll.u32 %s3, 4
      %s39 = int_to_ptr.hbm [resolvable:$true] %s38
      %s40 = sshll.u32 [#allocation5], 4
      %s41 = int_to_ptr.vmem [resolvable:$true] %s40
      %46 = dma.hbm_to_vmem [thread:$0]  %s39, 512, %s41, [#allocation6], 128, 128, 8
    $region17: #{lstm_net_forward.1} parent=1 // pred_fallthru
      _
    // Predicated region
    $region18: #{lstm_net_forward.1} parent=1 // pred_check
      _
    $region19: #{lstm_net_forward.1} parent=1 // pred_check_branch
      %48 = sbr.rel (0) target = $region21
    $region20: #{lstm_net_forward.1} parent=1 // pred_region
      _
    $region21: #{lstm_net_forward.1} parent=1 // pred_fallthru
      _
    // Predicated region
    $region22: #{lstm_net_forward.1} parent=1 // pred_check
      _
    $region23: #{lstm_net_forward.1} parent=1 // pred_check_branch
      %50 = sbr.rel (0) target = $region25
    $region24: #{lstm_net_forward.1} parent=1 // pred_region
      _
    $region25: #{lstm_net_forward.1} parent=1 // pred_fallthru
      _
    // Predicated region
    $region26: #{lstm_net_forward.1} parent=1 // pred_check
      _
    $region27: #{lstm_net_forward.1} parent=1 // pred_check_branch
      %52 = sbr.rel (0) target = $region29
    $region28: #{lstm_net_forward.1} parent=1 // pred_region
      _
    $region29: #{lstm_net_forward.1} parent=1 // pred_fallthru
      _
    // Predicated region
    $region30: #{lstm_net_forward.1} parent=1 // pred_check
      _
    $region31: #{lstm_net_forward.1} parent=1 // pred_check_branch
      %54 = sbr.rel (0) target = $region33
    $region32: #{lstm_net_forward.1} parent=1 // pred_region
      _
    $region33: #{lstm_net_forward.1} parent=1 // pred_fallthru
      _
    // Predicated region
    $region34: #{lstm_net_forward.1} parent=1 // pred_check
      _
    $region35: #{lstm_net_forward.1} parent=1 // pred_check_branch
      %56 = sbr.rel (0) target = $region37
    $region36: #{lstm_net_forward.1} parent=1 // pred_region
      _
    $region37: #{lstm_net_forward.1} parent=1 // pred_fallthru
      _
    // Predicated region
    $region38: #{lstm_net_forward.1} parent=1 // pred_check
      _
    $region39: #{lstm_net_forward.1} parent=1 // pred_check_branch
      %58 = sbr.rel (0) target = $region41
    $region40: #{lstm_net_forward.1} parent=1 // pred_region
      %60 = dma.done [#allocation3], 256
    $region41: #{lstm_net_forward.1} parent=1 // pred_fallthru
      _
    // Predicated region
    $region42: #{lstm_net_forward.1} parent=1 // pred_check
      _
    $region43: #{lstm_net_forward.1} parent=1 // pred_check_branch
      %62 = sbr.rel (0) target = $region45
    $region44: #{lstm_net_forward.1} parent=1 // pred_region
      %64 = dma.done [#allocation6], 512
    $region45: #{lstm_net_forward.1} parent=1 // pred_fallthru
      _
    %v65 = vld [vmem:[%s0] sm:$0xff]
    %v66 = vlaneseq
    %v67 = vand.u32 %v66, 127
    %68 = vset.pattern.permute.xlu0 0
    %69 = vperm.xlu0 %68, %v65
    %v70 = vpop.permute.xlu0 %69
    %vm71 = vcmp.eq.s32.totalorder %v70, %v67
    %v72 = vsel %vm71, 1, 0
    %v73 = vcvt.s32.f32 %v72
    %v74 = vld [vmem:[#allocation2] sm:$0xff]
    %v75 = vld [vmem:[#allocation2 + $0x8] sm:$0xff]
    %vm76 = vcmask 130048
    %v78 = vsel %vm76, %v73, 0
    %80 = vmatpush.msra.mxu0 0.0
    %81 = vmatpush.msra.mxu0 0.0
    %82 = vmatpush.msra.mxu0 0.0
    %83 = vmatpush.msra.mxu0 0.0
    %84 = vmatpush.msra.mxu0 0.0
    %85 = vmatpush.msra.mxu0 0.0
    %86 = vmatpush.msra.mxu0 0.0
    %87 = vmatpush.msra.mxu0 0.0
    %88 = vmatpush.msra.mxu0 0.0
    %89 = vmatpush.msra.mxu0 0.0
    %90 = vmatpush.msra.mxu0 0.0
    %91 = vmatpush.msra.mxu0 0.0
    %92 = vmatpush.msra.mxu0 0.0
    %93 = vmatpush.msra.mxu0 0.0
    %94 = vmatpush.msra.mxu0 %v75
    %95 = vmatpush.msra.mxu0 %v74
    %96 = vmatmul.f32.gmra.mxu0 %v78
    %v97 = vpop.f32.mrf.mxu0
    %v98 = vadd.f32 0.0, %v97
    %99 = vdwg.mxu0
    %v100 = vld [vmem:[%s2] sm:$0xff]
    %v101 = vld [vmem:[%s2 + $0x8] sm:$0xff]
    %v102 = vld [vmem:[%s2 + $0x10] sm:$0xff]
    %v103 = vld [vmem:[%s2 + $0x18] sm:$0xff]
    %v104 = vld [vmem:[%s4] sm:$0x1]
    %v106 = vperm.slane %v104, 0
    %vm108 = vcmask 261120
    %v110 = vsel %vm108, %v98, 0
    %112 = vmatpush.msra.mxu0 0.0
    %113 = vmatpush.msra.mxu0 0.0
    %114 = vmatpush.msra.mxu0 0.0
    %115 = vmatpush.msra.mxu0 0.0
    %116 = vmatpush.msra.mxu0 0.0
    %117 = vmatpush.msra.mxu0 0.0
    %118 = vmatpush.msra.mxu0 0.0
    %119 = vmatpush.msra.mxu0 0.0
    %120 = vmatpush.msra.mxu0 0.0
    %121 = vmatpush.msra.mxu0 0.0
    %122 = vmatpush.msra.mxu0 0.0
    %123 = vmatpush.msra.mxu0 0.0
    %124 = vmatpush.msra.mxu0 %v103
    %125 = vmatpush.msra.mxu0 %v102
    %126 = vmatpush.msra.mxu0 %v101
    %127 = vmatpush.msra.mxu0 %v100
    %128 = vmatmul.f32.gmra.mxu0 %v110
    %v129 = vpop.f32.mrf.mxu0
    %v130 = vadd.f32 %v106, %v129
    %131 = vdwg.mxu0
    %v132 = vld [vmem:[#allocation5] sm:$0xff]
    %v133 = vld [vmem:[#allocation5 + $0x8] sm:$0xff]
    %v134 = vld [vmem:[#allocation5 + $0x10] sm:$0xff]
    %v135 = vld [vmem:[#allocation5 + $0x18] sm:$0xff]
    %v136 = vld [vmem:[%s5] sm:$0x1]
    %v137 = vld [vmem:[%s6] sm:$0x1]
    %v139 = vsel %vm108, %v136, 0
    %141 = vmatpush.msra.mxu0 0.0
    %142 = vmatpush.msra.mxu0 0.0
    %143 = vmatpush.msra.mxu0 0.0
    %144 = vmatpush.msra.mxu0 0.0
    %145 = vmatpush.msra.mxu0 0.0
    %146 = vmatpush.msra.mxu0 0.0
    %147 = vmatpush.msra.mxu0 0.0
    %148 = vmatpush.msra.mxu0 0.0
    %149 = vmatpush.msra.mxu0 0.0
    %150 = vmatpush.msra.mxu0 0.0
    %151 = vmatpush.msra.mxu0 0.0
    %152 = vmatpush.msra.mxu0 0.0
    %153 = vmatpush.msra.mxu0 %v135
    %154 = vmatpush.msra.mxu0 %v134
    %155 = vmatpush.msra.mxu0 %v133
    %156 = vmatpush.msra.mxu0 %v132
    %157 = vmatmul.f32.gmra.mxu0 %v139
    %v158 = vpop.f32.mrf.mxu0
    %v159 = vadd.f32 0.0, %v158
    %160 = vdwg.mxu0
    %v161 = vadd.f32 %v130, %v159
    %v162 = vxor.u32 %v161, 2147483648
    %v163 = vmul.f32 %v162, 1.442695
    %v164 = vpow.pop %v163
    %v165 = vadd.f32 %v164, 1.0
    %v166 = vrcp.pop %v165
    %v167 = vmul.f32 %v165, %v166
    %v168 = vsub.f32 1.0, %v167
    %v169 = vmul.f32 %v166, %v168
    %v170 = vadd.f32 %v166, %v169
    %vm171 = vweird.f32 %v165
    %vm172 = vweird.f32 %v166
    %vm173 = vmor %vm171, %vm172
    %v174 = vsel %vm173, %v166, %v170
    %v175 = vand.u32 2147483647, %v165
    %vm176 = vcmp.eq.f32.partialorder %v175, 8.507059e+37
    %v177 = vand.u32 %v165, 2147483648
    %v178 = vor.u32 1.1754944e-38, %v177
    %v179 = vsel %vm176, %v178, %v174
    %v180 = vmul.f32 1.0, %v179
    %v181 = vtanh.pop %v161
    %v183 = vperm.slane %v137, 0
    %184 = vrot.lane.b32.xlu0 %v183, 32
    %v185 = vpop.permute.xlu0 %184
    %v187 = vmul.f32 %v180, %v185
    %189 = vrot.lane.b32.xlu0 %v181, 64
    %v190 = vpop.permute.xlu0 %189
    %v192 = vmul.f32 %v180, %v190
    %194 = vrot.lane.b32.xlu0 %v192, 32
    %v195 = vpop.permute.xlu0 %194
    %v197 = vadd.f32 %v187, %v195
    %v198 = vtanh.pop %v197
    %200 = vrot.lane.b32.xlu0 %v198, 64
    %v201 = vpop.permute.xlu0 %200
    %v203 = vmul.f32 %v180, %v201
    %205 = vrot.lane.b32.xlu0 %v203, 32
    %v206 = vpop.permute.xlu0 %205
    %v207 = vsel %vm108, %v206, 0
    %209 = vmatpush.msra.mxu0 0.0
    %210 = vmatpush.msra.mxu0 0.0
    %211 = vmatpush.msra.mxu0 0.0
    %212 = vmatpush.msra.mxu0 0.0
    %213 = vmatpush.msra.mxu0 0.0
    %214 = vmatpush.msra.mxu0 0.0
    %215 = vmatpush.msra.mxu0 0.0
    %216 = vmatpush.msra.mxu0 0.0
    %217 = vmatpush.msra.mxu0 0.0
    %218 = vmatpush.msra.mxu0 0.0
    %219 = vmatpush.msra.mxu0 0.0
    %220 = vmatpush.msra.mxu0 0.0
    %221 = vmatpush.msra.mxu0 %v135
    %222 = vmatpush.msra.mxu0 %v134
    %223 = vmatpush.msra.mxu0 %v133
    %224 = vmatpush.msra.mxu0 %v132
    %225 = vmatmul.f32.gmra.mxu0 %v207
    %v226 = vpop.f32.mrf.mxu0
    %v227 = vadd.f32 0.0, %v226
    %228 = vdwg.mxu0
    %v230 = vrot.slane %v227, 7
    %v232 = vadd.f32 %v130, %v230
    %v233 = vxor.u32 %v232, 2147483648
    %v234 = vmul.f32 %v233, 1.442695
    %v235 = vpow.pop %v234
    %v236 = vadd.f32 %v235, 1.0
    %v237 = vrcp.pop %v236
    %v238 = vmul.f32 %v236, %v237
    %v239 = vsub.f32 1.0, %v238
    %v240 = vmul.f32 %v237, %v239
    %v241 = vadd.f32 %v237, %v240
    %vm242 = vweird.f32 %v236
    %vm243 = vweird.f32 %v237
    %vm244 = vmor %vm242, %vm243
    %v245 = vsel %vm244, %v237, %v241
    %v246 = vand.u32 2147483647, %v236
    %vm247 = vcmp.eq.f32.partialorder %v246, 8.507059e+37
    %v248 = vand.u32 %v236, 2147483648
    %v249 = vor.u32 1.1754944e-38, %v248
    %v250 = vsel %vm247, %v249, %v245
    %v251 = vmul.f32 1.0, %v250
    %v252 = vtanh.pop %v232
    %v254 = vrot.slane %v197, 7
    %v256 = vmul.f32 %v251, %v254
    %258 = vrot.lane.b32.xlu0 %v252, 64
    %v259 = vpop.permute.xlu0 %258
    %v261 = vmul.f32 %v251, %v259
    %263 = vrot.lane.b32.xlu0 %v261, 32
    %v264 = vpop.permute.xlu0 %263
    %v266 = vadd.f32 %v256, %v264
    %v267 = vtanh.pop %v266
    %269 = vrot.lane.b32.xlu0 %v267, 64
    %v270 = vpop.permute.xlu0 %269
    %v272 = vmul.f32 %v251, %v270
    %v274 = vrot.slane %v272, 1
    %275 = vrot.lane.b32.xlu0 %v274, 32
    %v276 = vpop.permute.xlu0 %275
    %v277 = vsel %vm108, %v276, 0
    %279 = vmatpush.msra.mxu0 0.0
    %280 = vmatpush.msra.mxu0 0.0
    %281 = vmatpush.msra.mxu0 0.0
    %282 = vmatpush.msra.mxu0 0.0
    %283 = vmatpush.msra.mxu0 0.0
    %284 = vmatpush.msra.mxu0 0.0
    %285 = vmatpush.msra.mxu0 0.0
    %286 = vmatpush.msra.mxu0 0.0
    %287 = vmatpush.msra.mxu0 0.0
    %288 = vmatpush.msra.mxu0 0.0
    %289 = vmatpush.msra.mxu0 0.0
    %290 = vmatpush.msra.mxu0 0.0
    %291 = vmatpush.msra.mxu0 %v135
    %292 = vmatpush.msra.mxu0 %v134
    %293 = vmatpush.msra.mxu0 %v133
    %294 = vmatpush.msra.mxu0 %v132
    %295 = vmatmul.f32.gmra.mxu0 %v277
    %v296 = vpop.f32.mrf.mxu0
    %v297 = vadd.f32 0.0, %v296
    %298 = vdwg.mxu0
    %v300 = vrot.slane %v297, 6
    %v302 = vadd.f32 %v130, %v300
    %v303 = vxor.u32 %v302, 2147483648
    %v304 = vmul.f32 %v303, 1.442695
    %v305 = vpow.pop %v304
    %v306 = vadd.f32 %v305, 1.0
    %v307 = vrcp.pop %v306
    %v308 = vmul.f32 %v306, %v307
    %v309 = vsub.f32 1.0, %v308
    %v310 = vmul.f32 %v307, %v309
    %v311 = vadd.f32 %v307, %v310
    %vm312 = vweird.f32 %v306
    %vm313 = vweird.f32 %v307
    %vm314 = vmor %vm312, %vm313
    %v315 = vsel %vm314, %v307, %v311
    %v316 = vand.u32 2147483647, %v306
    %vm317 = vcmp.eq.f32.partialorder %v316, 8.507059e+37
    %v318 = vand.u32 %v306, 2147483648
    %v319 = vor.u32 1.1754944e-38, %v318
    %v320 = vsel %vm317, %v319, %v315
    %v321 = vmul.f32 1.0, %v320
    %v322 = vtanh.pop %v302
    %v324 = vrot.slane %v266, 7
    %v326 = vmul.f32 %v321, %v324
    %328 = vrot.lane.b32.xlu0 %v322, 64
    %v329 = vpop.permute.xlu0 %328
    %v331 = vmul.f32 %v321, %v329
    %333 = vrot.lane.b32.xlu0 %v331, 32
    %v334 = vpop.permute.xlu0 %333
    %v336 = vadd.f32 %v326, %v334
    %v337 = vtanh.pop %v336
    %339 = vrot.lane.b32.xlu0 %v337, 64
    %v340 = vpop.permute.xlu0 %339
    %v342 = vmul.f32 %v321, %v340
    %v344 = vrot.slane %v342, 2
    %345 = vrot.lane.b32.xlu0 %v344, 32
    %v346 = vpop.permute.xlu0 %345
    %v347 = vsel %vm108, %v346, 0
    %349 = vmatpush.msra.mxu0 0.0
    %350 = vmatpush.msra.mxu0 0.0
    %351 = vmatpush.msra.mxu0 0.0
    %352 = vmatpush.msra.mxu0 0.0
    %353 = vmatpush.msra.mxu0 0.0
    %354 = vmatpush.msra.mxu0 0.0
    %355 = vmatpush.msra.mxu0 0.0
    %356 = vmatpush.msra.mxu0 0.0
    %357 = vmatpush.msra.mxu0 0.0
    %358 = vmatpush.msra.mxu0 0.0
    %359 = vmatpush.msra.mxu0 0.0
    %360 = vmatpush.msra.mxu0 0.0
    %361 = vmatpush.msra.mxu0 %v135
    %362 = vmatpush.msra.mxu0 %v134
    %363 = vmatpush.msra.mxu0 %v133
    %364 = vmatpush.msra.mxu0 %v132
    %365 = vmatmul.f32.gmra.mxu0 %v347
    %v366 = vpop.f32.mrf.mxu0
    %v367 = vadd.f32 0.0, %v366
    %368 = vdwg.mxu0
    %v370 = vrot.slane %v367, 5
    %v372 = vadd.f32 %v130, %v370
    %v373 = vxor.u32 %v372, 2147483648
    %v374 = vmul.f32 %v373, 1.442695
    %v375 = vpow.pop %v374
    %v376 = vadd.f32 %v375, 1.0
    %v377 = vrcp.pop %v376
    %v378 = vmul.f32 %v376, %v377
    %v379 = vsub.f32 1.0, %v378
    %v380 = vmul.f32 %v377, %v379
    %v381 = vadd.f32 %v377, %v380
    %vm382 = vweird.f32 %v376
    %vm383 = vweird.f32 %v377
    %vm384 = vmor %vm382, %vm383
    %v385 = vsel %vm384, %v377, %v381
    %v386 = vand.u32 2147483647, %v376
    %vm387 = vcmp.eq.f32.partialorder %v386, 8.507059e+37
    %v388 = vand.u32 %v376, 2147483648
    %v389 = vor.u32 1.1754944e-38, %v388
    %v390 = vsel %vm387, %v389, %v385
    %v391 = vmul.f32 1.0, %v390
    %v392 = vtanh.pop %v372
    %v394 = vrot.slane %v336, 7
    %v396 = vmul.f32 %v391, %v394
    %398 = vrot.lane.b32.xlu0 %v392, 64
    %v399 = vpop.permute.xlu0 %398
    %v401 = vmul.f32 %v391, %v399
    %403 = vrot.lane.b32.xlu0 %v401, 32
    %v404 = vpop.permute.xlu0 %403
    %v406 = vadd.f32 %v396, %v404
    %v407 = vtanh.pop %v406
    %409 = vrot.lane.b32.xlu0 %v407, 64
    %v410 = vpop.permute.xlu0 %409
    %v412 = vmul.f32 %v391, %v410
    %v414 = vrot.slane %v412, 3
    %415 = vrot.lane.b32.xlu0 %v414, 32
    %v416 = vpop.permute.xlu0 %415
    %v417 = vsel %vm108, %v416, 0
    %419 = vmatpush.msra.mxu0 0.0
    %420 = vmatpush.msra.mxu0 0.0
    %421 = vmatpush.msra.mxu0 0.0
    %422 = vmatpush.msra.mxu0 0.0
    %423 = vmatpush.msra.mxu0 0.0
    %424 = vmatpush.msra.mxu0 0.0
    %425 = vmatpush.msra.mxu0 0.0
    %426 = vmatpush.msra.mxu0 0.0
    %427 = vmatpush.msra.mxu0 0.0
    %428 = vmatpush.msra.mxu0 0.0
    %429 = vmatpush.msra.mxu0 0.0
    %430 = vmatpush.msra.mxu0 0.0
    %431 = vmatpush.msra.mxu0 %v135
    %432 = vmatpush.msra.mxu0 %v134
    %433 = vmatpush.msra.mxu0 %v133
    %434 = vmatpush.msra.mxu0 %v132
    %435 = vmatmul.f32.gmra.mxu0 %v417
    %v436 = vpop.f32.mrf.mxu0
    %v437 = vadd.f32 0.0, %v436
    %438 = vdwg.mxu0
    %v440 = vrot.slane %v437, 4
    %v442 = vadd.f32 %v130, %v440
    %v443 = vxor.u32 %v442, 2147483648
    %v444 = vmul.f32 %v443, 1.442695
    %v445 = vpow.pop %v444
    %v446 = vadd.f32 %v445, 1.0
    %v447 = vrcp.pop %v446
    %v448 = vmul.f32 %v446, %v447
    %v449 = vsub.f32 1.0, %v448
    %v450 = vmul.f32 %v447, %v449
    %v451 = vadd.f32 %v447, %v450
    %vm452 = vweird.f32 %v446
    %vm453 = vweird.f32 %v447
    %vm454 = vmor %vm452, %vm453
    %v455 = vsel %vm454, %v447, %v451
    %v456 = vand.u32 2147483647, %v446
    %vm457 = vcmp.eq.f32.partialorder %v456, 8.507059e+37
    %v458 = vand.u32 %v446, 2147483648
    %v459 = vor.u32 1.1754944e-38, %v458
    %v460 = vsel %vm457, %v459, %v455
    %v461 = vmul.f32 1.0, %v460
    %v462 = vtanh.pop %v442
    %v464 = vrot.slane %v406, 7
    %v466 = vmul.f32 %v461, %v464
    %468 = vrot.lane.b32.xlu0 %v462, 64
    %v469 = vpop.permute.xlu0 %468
    %v471 = vmul.f32 %v461, %v469
    %473 = vrot.lane.b32.xlu0 %v471, 32
    %v474 = vpop.permute.xlu0 %473
    %v476 = vadd.f32 %v466, %v474
    %v477 = vtanh.pop %v476
    %479 = vrot.lane.b32.xlu0 %v477, 64
    %v480 = vpop.permute.xlu0 %479
    %v482 = vmul.f32 %v461, %v480
    %v484 = vrot.slane %v482, 4
    %485 = vrot.lane.b32.xlu0 %v484, 32
    %v486 = vpop.permute.xlu0 %485
    %v487 = vsel %vm108, %v486, 0
    %489 = vmatpush.msra.mxu0 0.0
    %490 = vmatpush.msra.mxu0 0.0
    %491 = vmatpush.msra.mxu0 0.0
    %492 = vmatpush.msra.mxu0 0.0
    %493 = vmatpush.msra.mxu0 0.0
    %494 = vmatpush.msra.mxu0 0.0
    %495 = vmatpush.msra.mxu0 0.0
    %496 = vmatpush.msra.mxu0 0.0
    %497 = vmatpush.msra.mxu0 0.0
    %498 = vmatpush.msra.mxu0 0.0
    %499 = vmatpush.msra.mxu0 0.0
    %500 = vmatpush.msra.mxu0 0.0
    %501 = vmatpush.msra.mxu0 %v135
    %502 = vmatpush.msra.mxu0 %v134
    %503 = vmatpush.msra.mxu0 %v133
    %504 = vmatpush.msra.mxu0 %v132
    %505 = vmatmul.f32.gmra.mxu0 %v487
    %v506 = vpop.f32.mrf.mxu0
    %v507 = vadd.f32 0.0, %v506
    %508 = vdwg.mxu0
    %v510 = vrot.slane %v507, 3
    %v512 = vadd.f32 %v130, %v510
    %v513 = vxor.u32 %v512, 2147483648
    %v514 = vmul.f32 %v513, 1.442695
    %v515 = vpow.pop %v514
    %v516 = vadd.f32 %v515, 1.0
    %v517 = vrcp.pop %v516
    %v518 = vmul.f32 %v516, %v517
    %v519 = vsub.f32 1.0, %v518
    %v520 = vmul.f32 %v517, %v519
    %v521 = vadd.f32 %v517, %v520
    %vm522 = vweird.f32 %v516
    %vm523 = vweird.f32 %v517
    %vm524 = vmor %vm522, %vm523
    %v525 = vsel %vm524, %v517, %v521
    %v526 = vand.u32 2147483647, %v516
    %vm527 = vcmp.eq.f32.partialorder %v526, 8.507059e+37
    %v528 = vand.u32 %v516, 2147483648
    %v529 = vor.u32 1.1754944e-38, %v528
    %v530 = vsel %vm527, %v529, %v525
    %v531 = vmul.f32 1.0, %v530
    %v532 = vtanh.pop %v512
    %v534 = vrot.slane %v476, 7
    %v536 = vmul.f32 %v531, %v534
    %538 = vrot.lane.b32.xlu0 %v532, 64
    %v539 = vpop.permute.xlu0 %538
    %v541 = vmul.f32 %v531, %v539
    %543 = vrot.lane.b32.xlu0 %v541, 32
    %v544 = vpop.permute.xlu0 %543
    %v546 = vadd.f32 %v536, %v544
    %v547 = vtanh.pop %v546
    %549 = vrot.lane.b32.xlu0 %v547, 64
    %v550 = vpop.permute.xlu0 %549
    %v552 = vmul.f32 %v531, %v550
    %v554 = vrot.slane %v552, 5
    %555 = vrot.lane.b32.xlu0 %v554, 32
    %v556 = vpop.permute.xlu0 %555
    %v557 = vsel %vm108, %v556, 0
    %559 = vmatpush.msra.mxu0 0.0
    %560 = vmatpush.msra.mxu0 0.0
    %561 = vmatpush.msra.mxu0 0.0
    %562 = vmatpush.msra.mxu0 0.0
    %563 = vmatpush.msra.mxu0 0.0
    %564 = vmatpush.msra.mxu0 0.0
    %565 = vmatpush.msra.mxu0 0.0
    %566 = vmatpush.msra.mxu0 0.0
    %567 = vmatpush.msra.mxu0 0.0
    %568 = vmatpush.msra.mxu0 0.0
    %569 = vmatpush.msra.mxu0 0.0
    %570 = vmatpush.msra.mxu0 0.0
    %571 = vmatpush.msra.mxu0 %v135
    %572 = vmatpush.msra.mxu0 %v134
    %573 = vmatpush.msra.mxu0 %v133
    %574 = vmatpush.msra.mxu0 %v132
    %575 = vmatmul.f32.gmra.mxu0 %v557
    %v576 = vpop.f32.mrf.mxu0
    %v577 = vadd.f32 0.0, %v576
    %578 = vdwg.mxu0
    %v580 = vrot.slane %v577, 2
    %v582 = vadd.f32 %v130, %v580
    %v583 = vxor.u32 %v582, 2147483648
    %v584 = vmul.f32 %v583, 1.442695
    %v585 = vpow.pop %v584
    %v586 = vadd.f32 %v585, 1.0
    %v587 = vrcp.pop %v586
    %v588 = vmul.f32 %v586, %v587
    %v589 = vsub.f32 1.0, %v588
    %v590 = vmul.f32 %v587, %v589
    %v591 = vadd.f32 %v587, %v590
    %vm592 = vweird.f32 %v586
    %vm593 = vweird.f32 %v587
    %vm594 = vmor %vm592, %vm593
    %v595 = vsel %vm594, %v587, %v591
    %v596 = vand.u32 2147483647, %v586
    %vm597 = vcmp.eq.f32.partialorder %v596, 8.507059e+37
    %v598 = vand.u32 %v586, 2147483648
    %v599 = vor.u32 1.1754944e-38, %v598
    %v600 = vsel %vm597, %v599, %v595
    %v601 = vmul.f32 1.0, %v600
    %v602 = vtanh.pop %v582
    %v604 = vrot.slane %v546, 7
    %v606 = vmul.f32 %v601, %v604
    %608 = vrot.lane.b32.xlu0 %v602, 64
    %v609 = vpop.permute.xlu0 %608
    %v611 = vmul.f32 %v601, %v609
    %613 = vrot.lane.b32.xlu0 %v611, 32
    %v614 = vpop.permute.xlu0 %613
    %v616 = vadd.f32 %v606, %v614
    %v617 = vtanh.pop %v616
    %619 = vrot.lane.b32.xlu0 %v617, 64
    %v620 = vpop.permute.xlu0 %619
    %v622 = vmul.f32 %v601, %v620
    %v624 = vrot.slane %v622, 6
    %625 = vrot.lane.b32.xlu0 %v624, 32
    %v626 = vpop.permute.xlu0 %625
    %v627 = vsel %vm108, %v626, 0
    %629 = vmatpush.msra.mxu0 0.0
    %630 = vmatpush.msra.mxu0 0.0
    %631 = vmatpush.msra.mxu0 0.0
    %632 = vmatpush.msra.mxu0 0.0
    %633 = vmatpush.msra.mxu0 0.0
    %634 = vmatpush.msra.mxu0 0.0
    %635 = vmatpush.msra.mxu0 0.0
    %636 = vmatpush.msra.mxu0 0.0
    %637 = vmatpush.msra.mxu0 0.0
    %638 = vmatpush.msra.mxu0 0.0
    %639 = vmatpush.msra.mxu0 0.0
    %640 = vmatpush.msra.mxu0 0.0
    %641 = vmatpush.msra.mxu0 %v135
    %642 = vmatpush.msra.mxu0 %v134
    %643 = vmatpush.msra.mxu0 %v133
    %644 = vmatpush.msra.mxu0 %v132
    %645 = vmatmul.f32.gmra.mxu0 %v627
    %v646 = vpop.f32.mrf.mxu0
    %v647 = vadd.f32 0.0, %v646
    %648 = vdwg.mxu0
    %v650 = vrot.slane %v647, 1
    %v652 = vadd.f32 %v130, %v650
    %v653 = vxor.u32 %v652, 2147483648
    %v654 = vmul.f32 %v653, 1.442695
    %v655 = vpow.pop %v654
    %v656 = vadd.f32 %v655, 1.0
    %v657 = vrcp.pop %v656
    %v658 = vmul.f32 %v656, %v657
    %v659 = vsub.f32 1.0, %v658
    %v660 = vmul.f32 %v657, %v659
    %v661 = vadd.f32 %v657, %v660
    %vm662 = vweird.f32 %v656
    %vm663 = vweird.f32 %v657
    %vm664 = vmor %vm662, %vm663
    %v665 = vsel %vm664, %v657, %v661
    %v666 = vand.u32 2147483647, %v656
    %vm667 = vcmp.eq.f32.partialorder %v666, 8.507059e+37
    %v668 = vand.u32 %v656, 2147483648
    %v669 = vor.u32 1.1754944e-38, %v668
    %v670 = vsel %vm667, %v669, %v665
    %v671 = vmul.f32 1.0, %v670
    %v672 = vtanh.pop %v652
    %v674 = vrot.slane %v616, 7
    %v676 = vmul.f32 %v671, %v674
    %678 = vrot.lane.b32.xlu0 %v672, 64
    %v679 = vpop.permute.xlu0 %678
    %v681 = vmul.f32 %v671, %v679
    %683 = vrot.lane.b32.xlu0 %v681, 32
    %v684 = vpop.permute.xlu0 %683
    %v686 = vadd.f32 %v676, %v684
    %v687 = vtanh.pop %v686
    %689 = vrot.lane.b32.xlu0 %v687, 64
    %v690 = vpop.permute.xlu0 %689
    %v692 = vmul.f32 %v671, %v690
    %v693 = vld [vmem:[%s7] sm:$0xff]
    %v694 = vld [vmem:[%s7 + $0x8] sm:$0xff]
    %v695 = vld [vmem:[%s7 + $0x10] sm:$0xff]
    %v696 = vld [vmem:[%s7 + $0x18] sm:$0xff]
    %v697 = vld [vmem:[%s8] sm:$0x1]
    %v699 = vrot.slane %v692, 7
    %700 = vrot.lane.b32.xlu0 %v699, 32
    %v701 = vpop.permute.xlu0 %700
    %v702 = vsel %vm108, %v701, 0
    %704 = vmatpush.msra.mxu0 0.0
    %705 = vmatpush.msra.mxu0 0.0
    %706 = vmatpush.msra.mxu0 0.0
    %707 = vmatpush.msra.mxu0 0.0
    %708 = vmatpush.msra.mxu0 0.0
    %709 = vmatpush.msra.mxu0 0.0
    %710 = vmatpush.msra.mxu0 0.0
    %711 = vmatpush.msra.mxu0 0.0
    %712 = vmatpush.msra.mxu0 0.0
    %713 = vmatpush.msra.mxu0 0.0
    %714 = vmatpush.msra.mxu0 0.0
    %715 = vmatpush.msra.mxu0 0.0
    %716 = vmatpush.msra.mxu0 %v696
    %717 = vmatpush.msra.mxu0 %v695
    %718 = vmatpush.msra.mxu0 %v694
    %719 = vmatpush.msra.mxu0 %v693
    %720 = vmatmul.f32.gmra.mxu0 %v702
    %v721 = vpop.f32.mrf.mxu0
    %v722 = vadd.f32 %v697, %v721
    %723 = vdwg.mxu0
    %vm724 = vcmask 24576
    %v725 = vsel %vm724, %v722, -inf
    %726 = vmax.xlane.f32.xlu0 %v725
    %v727 = vpop.xlane.xlu0 %726
    %v728 = vsub.f32 %v722, %v727
    %v729 = vmul.f32 %v728, 1.442695
    %v730 = vpow.pop %v729
    %v731 = vsel %vm724, %v730, 0.0
    %732 = vadd.xlane.f32.xlu0 %v731
    %v733 = vpop.xlane.xlu0 %732
    %v734 = vlog2.pop %v733
    %v735 = vmul.f32 %v734, 0.6931472
    %v736 = vadd.f32 %v727, %v735
    %v737 = vsub.f32 %v722, %v736
    %738 = vst.msk [vmem:[#allocation7] sm:$0x1] %vm724, %v737
    // Predicated region
    $region46: #{lstm_net_forward.1} parent=1 // pred_check
      _
    $region47: #{lstm_net_forward.1} parent=1 // pred_check_branch
      %740 = sbr.rel (0) target = $region49
    $region48: #{lstm_net_forward.1} parent=1 // pred_region
      %742 = vsyncadd [#allocation4], 0
      %s744 = sshll.u32 [#allocation7], 4
      %s745 = int_to_ptr.vmem [resolvable:$true] %s744
      %s746 = sshll.u32 %s9, 4
      %s747 = int_to_ptr.hbm [resolvable:$true] %s746
      %749 = dma.vmem_to_hbm [thread:$0]  %s745, 16, %s747, [#allocation4]
    $region49: #{lstm_net_forward.1} parent=1 // pred_fallthru
      _
    // Predicated region
    $region50: #{lstm_net_forward.1} parent=1 // pred_check
      _
    $region51: #{lstm_net_forward.1} parent=1 // pred_check_branch
      %751 = sbr.rel (0) target = $region53
    $region52: #{lstm_net_forward.1} parent=1 // pred_region
      %753 = dma.done [#allocation4], 16
    $region53: #{lstm_net_forward.1} parent=1 // pred_fallthru
      _
    %754 = vsyncpa [#allocation3], 1
    %755 = vsyncpa [#allocation6], 1
    %756 = vsyncpa [#allocation4], 1

</llo_original>
